<compile_context>
chip_gen: v7x
topology: tpu7x:2x2x1
jax: 0.10.0
libtpu: 0.0.40
codegen_flags: <defaults>
</compile_context>

<pallas_src>
import jax
import jax.numpy as jnp
from jax.experimental import pallas as pl
from jax.experimental.pallas import tpu as pltpu


def _round_up(n: int, m: int) -> int:
    return ((n + m - 1) // m) * m


def _round_down(n: int, m: int) -> int:
    return (n // m) * m


def _linreg_kernel(c_ref, v_ref, x_ref, o_ref):
    # c_ref: SMEM (1, 1)   scalar  b . sense                      (resident)
    # v_ref: VMEM (1, D)   row vector  sense @ W  (= W^T sense)   (resident)
    # x_ref: VMEM (tm, D)  tile of sentence-vector rows. Rows at/after M (the sense
    #                      row / BlockSpec edge padding of undefined contents) only
    #                      feed output lanes >= M, which the wrapper slices off.
    # o_ref: VMEM (1, tm)  lane-dense output tile.
    #
    # Contract the LAST (lane) dims of (1, D) x (tm, D) -> (1, tm): no transpose,
    # M on the lane axis => dense vector stores.  f32 accumulation.
    s = jax.lax.dot_general(
        v_ref[...], x_ref[...],
        dimension_numbers=(((1,), (1,)), ((), ())),
        preferred_element_type=jnp.float32,
    )
    o_ref[...] = jax.nn.sigmoid(s + c_ref[0, 0]).astype(o_ref.dtype)


def linear_regression_forward(x, W, b, *, target_tile_bytes: int = 4 * 1024 * 1024):
    """Forward pass of the LinearRegression module.

    x: (N, D) -- rows 0..N-2 are sentence vectors, row N-1 is the sense vector.
       (f32, or bf16 if the caller already stores it that way.)
    W: (D_out, D_in) = nn.Linear.weight;  b: (D_out,) = nn.Linear.bias.
    Returns sigmoid((x[:-1] @ W^T + b) @ x[-1]) with shape (N-1,), f32.
    """
    N, D_in = x.shape
    D_out, D_in_w = W.shape
    if D_in_w != D_in:
        raise ValueError(f"W input dim {D_in_w} != feature dim {D_in}")
    if D_out != D_in:
        raise ValueError(
            "The reference's np.dot(linear(sv), sense) requires output_size == "
            f"input_size; got output_size={D_out}, input_size={D_in}")
    if N < 2:
        raise ValueError("x needs at least one sentence vector plus the sense vector")
    M = N - 1

    # ---- hoisted small math (once per call, tiny XLA ops) -------------------------
    sense_row = x[-1:].astype(jnp.float32)                     # (1, D)
    w_f32 = W.astype(jnp.float32)
    v = jnp.dot(sense_row, w_f32,
                preferred_element_type=jnp.float32)            # (1, D) = sense @ W
    c = jnp.sum(b.astype(jnp.float32) * sense_row[0]).reshape(1, 1)   # (1, 1) = b.sense
    v = v.astype(x.dtype)   # match the streamed dtype for the in-kernel contraction

    # ---- tile sizing by bytes ------------------------------------------------------
    # Target ~target_tile_bytes per x tile (double-buffered by the pipeline), rounded
    # down to a multiple of 128 so multi-tile (1, tm) output blocks are lane-aligned
    # and unmasked.  Single-tile case rounds M up to a multiple of 8 (f32 sublane).
    itemsize = jnp.dtype(x.dtype).itemsize
    tm_cap = max(128, _round_down(max(128, target_tile_bytes // (itemsize * D_in)), 128))
    if M <= tm_cap:
        tm = _round_up(M, 8)     # one tile; (1, tm) == full output => no lane-128 rule
        grid_m = 1
    else:
        tm = tm_cap              # multiple of 128 => dense lane stores
        grid_m = pl.cdiv(M, tm)
    m_pad = grid_m * tm

    out = pl.pallas_call(
        _linreg_kernel,
        out_shape=jax.ShapeDtypeStruct((1, m_pad), jnp.float32),
        grid=(grid_m,),
        in_specs=[
            # c: whole (1,1) scalar in SMEM, resident across the grid.
            pl.BlockSpec(memory_space=pltpu.MemorySpace.SMEM),
            # v: (1, D) row vector, resident in VMEM.
            pl.BlockSpec((1, D_in), lambda i: (0, 0)),
            # x: tiled over rows; tile i covers rows [i*tm, (i+1)*tm).  Rows at or
            # beyond M only feed discarded output lanes (see wrapper slice below).
            pl.BlockSpec((tm, D_in), lambda i: (i, 0)),
        ],
        out_specs=pl.BlockSpec((1, tm), lambda i: (0, i)),
        compiler_params=pltpu.CompilerParams(
            # Independent output tiles: v7x's two TensorCores shard the M axis.
            dimension_semantics=("parallel",),
        ),
    )(c, v, x)

    return out[0, :M]


if __name__ == "__main__":
    key = jax.random.PRNGKey(0)

    def lattice_inputs(key, N, D):
        # Inputs on a {-1, 0, 1} lattice (weights/bias scaled by 1/16 = exact power
        # of 2): every product/partial sum is exactly representable, so the fused
        # kernel and the module-order reference agree to sigmoid rounding regardless
        # of MXU precision mode.
        kx, kw, kb = jax.random.split(key, 3)
        x = jax.random.randint(kx, (N, D), -1, 2).astype(jnp.float32)
        W = jax.random.randint(kw, (D, D), -1, 2).astype(jnp.float32) / 16.0
        b = jax.random.randint(kb, (D,), -1, 2).astype(jnp.float32) / 16.0
        return x, W, b

    def reference(x, W, b):
        return jax.nn.sigmoid((x[:-1] @ W.T + b) @ x[-1])

    # Case 1: small shapes -- N = 9 rows (8 sentence vectors + 1 sense vector),
    # D = 128 = input_size = output_size.  Single tile.
    N, D = 9, 128
    x, W, b = lattice_inputs(key, N, D)
    y = jax.block_until_ready(linear_regression_forward(x, W, b))
    ref = reference(x, W, b)
    assert y.shape == (N - 1,)
    assert jnp.allclose(y, ref, atol=1e-5, rtol=1e-5), "case 1 mismatch vs reference"

    # Case 2: force the multi-tile, lane-dense path (tm = 128, grid_m = 3) with a
    # tiny tile-byte target; M = 384 sentence vectors, D = 128.
    N2, D2 = 385, 128
    x2, W2, b2 = lattice_inputs(jax.random.PRNGKey(1), N2, D2)
    y2 = jax.block_until_ready(
        linear_regression_forward(x2, W2, b2, target_tile_bytes=128 * 128 * 4))
    ref2 = reference(x2, W2, b2)
    assert y2.shape == (N2 - 1,)
    assert jnp.allclose(y2, ref2, atol=1e-5, rtol=1e-5), "case 2 mismatch vs reference"

    print("KERNEL_OK")
</pallas_src>

<mosaic_0001>
module attributes {stable_mosaic.version = 11 : i64} {
  func.func @_linreg_kernel(%arg0: i32, %arg1: memref<1x1xf32, #tpu.memory_space<smem>>, %arg2: memref<1x128xf32, #tpu.memory_space<vmem>>, %arg3: memref<8x128xf32, #tpu.memory_space<vmem>>, %arg4: memref<1x8xf32, #tpu.memory_space<vmem>>) attributes {dimension_semantics = [#tpu.dimension_semantics<parallel>], iteration_bounds = array<i64: 1>, scalar_prefetch = 0 : i64, scratch_operands = 0 : i64, tpu.core_type = #tpu.core_type<tc>, window_params = [{transform_indices = @transform_0, window_bounds = array<i64: 1, 1>}, {pipeline_mode = #tpu.pipeline_mode<synchronous>, transform_indices = @transform_1, window_bounds = array<i64: 1, 128>}, {transform_indices = @transform_2, window_bounds = array<i64: 8, 128>}, {transform_indices = @transform_3, window_bounds = array<i64: 1, 8>}]} {
    %c0 = arith.constant 0 : index
    %c0_0 = arith.constant 0 : index
    %0 = vector.load %arg2[%c0, %c0_0] : memref<1x128xf32, #tpu.memory_space<vmem>>, vector<1x128xf32>
    %c0_1 = arith.constant 0 : index
    %c0_2 = arith.constant 0 : index
    %1 = vector.load %arg3[%c0_1, %c0_2] : memref<8x128xf32, #tpu.memory_space<vmem>>, vector<8x128xf32>
    %cst = arith.constant dense<0.000000e+00> : vector<1x8xf32>
    %2 = tpu.matmul %0, %1, %cst {dimension_numbers = #tpu.dot_dimension_numbers<[1], [1], [0], [0], [0, 0, 1, 0], [], []>} : vector<1x128xf32>, vector<8x128xf32>, vector<1x8xf32> -> vector<1x8xf32>
    %c0_3 = arith.constant 0 : index
    %c0_4 = arith.constant 0 : index
    %3 = memref.load %arg1[%c0_3, %c0_4] : memref<1x1xf32, #tpu.memory_space<smem>>
    %4 = vector.broadcast %3 : f32 to vector<1x8xf32>
    %5 = arith.addf %2, %4 : vector<1x8xf32>
    %6 = arith.negf %5 : vector<1x8xf32>
    %7 = math.exp %6 : vector<1x8xf32>
    %cst_5 = arith.constant 1.000000e+00 : f32
    %8 = vector.broadcast %cst_5 : f32 to vector<1x8xf32>
    %9 = arith.addf %8, %7 : vector<1x8xf32>
    %10 = arith.divf %8, %9 : vector<1x8xf32>
    %c0_6 = arith.constant 0 : index
    %c0_7 = arith.constant 0 : index
    %11 = vector.load %arg4[%c0_6, %c0_7] : memref<1x8xf32, #tpu.memory_space<vmem>>, vector<1x8xf32>
    tpu.vector_store %arg4[%c0_6, %c0_7], %10 {strides = array<i32>} : memref<1x8xf32, #tpu.memory_space<vmem>>, vector<1x8xf32>,
    return
  }
  func.func @transform_0(%arg0: i32) -> (i32, i32) {
    %c0_i32 = arith.constant 0 : i32
    %c0_i32_0 = arith.constant 0 : i32
    %c0_i32_1 = arith.constant 0 : i32
    return %c0_i32, %c0_i32_0 : i32, i32
  }
  func.func @transform_1(%arg0: i32) -> (i32, i32) {
    %c0_i32 = arith.constant 0 : i32
    %c0_i32_0 = arith.constant 0 : i32
    %c0_i32_1 = arith.constant 0 : i32
    return %c0_i32, %c0_i32_0 : i32, i32
  }
  func.func @transform_2(%arg0: i32) -> (i32, i32) {
    %c0_i32 = arith.constant 0 : i32
    %c0_i32_0 = arith.constant 0 : i32
    return %arg0, %c0_i32 : i32, i32
  }
  func.func @transform_3(%arg0: i32) -> (i32, i32) {
    %c0_i32 = arith.constant 0 : i32
    %c0_i32_0 = arith.constant 0 : i32
    return %c0_i32, %arg0 : i32, i32
  }
}

</mosaic_0001>

<llo_original>
// kernel: tpu_custom_call.1
$region0: #{tpu_custom_call.1}
  #allocation0 [shape = 'u32[]', space=smem, size = 0x4, offset = 0x4, fixed_abs, tag = 'smem constant byte address 0x4 - core index']
  #allocation1 [shape = 'u32[144,128]{1,0:T(1,128)}', space=vmem, size = 0x12000, scoped, tag = 'internal scratch']
  #allocation2 [shape = 'f32[1,1]{1,0:T(1,128)S(6)}', space=smem, size = 0x200, scoped, tag = 'scoped memory for tpu_custom_call.1']
  %s0 = inlined_call_operand.<no memory space> [shape: f32[1,1], index: 0, kind: input, shape index: {}]
  %s1 = inlined_call_operand.vmem [shape: f32[1,128], index: 1, kind: input, shape index: {}]
  %s2 = inlined_call_operand.hbm [shape: f32[9,128], index: 2, kind: input, shape index: {}]
  %s3 = inlined_call_operand.hbm [shape: f32[1,8], index: 3, kind: output, shape index: {}]
  %s4 = sld [smem:[#allocation0]]
  $region26: #{tpu_custom_call.1} parent=0
    _
  %s6 = ssub.s32 1, %s4
  %s7 = scalar_select 0, %s6, %s4
  %8 = sst [smem:[#allocation2]] %s0
  $region1: #{tpu_custom_call.1} parent=0
    #allocation3 [shape = 'u8[4096]{0}', space=vmem, size = 0x1000, scoped, tag = 'input window, operand 2, single buffered']
    #allocation4 [shape = 's32[1]{0}', space=sflag, size = 0x4, scoped, tag = 'scoped memory for tpu_custom_call.1']
    #allocation5 [shape = 's32[1]{0}', space=sflag, size = 0x4, scoped, tag = 'scoped memory for tpu_custom_call.1']
    #allocation6 [shape = 'u8[512]{0}', space=vmem, size = 0x400, scoped, tag = 'output window, operand 0, single buffered']
    %9 = vsyncpa [#allocation4], 0
    %10 = vsyncpa [#allocation5], 0
    // Predicated region
    $region2: #{tpu_custom_call.1} parent=1 // pred_check
      _
    $region3: #{tpu_custom_call.1} parent=1 // pred_check_branch
      %12 = sbr.rel (0) target = $region5
    $region4: #{tpu_custom_call.1} parent=1 // pred_region
      _
    $region5: #{tpu_custom_call.1} parent=1 // pred_fallthru
      _
    // Predicated region
    $region6: #{tpu_custom_call.1} parent=1 // pred_check
      _
    $region7: #{tpu_custom_call.1} parent=1 // pred_check_branch
      %14 = sbr.rel (0) target = $region9
    $region8: #{tpu_custom_call.1} parent=1 // pred_region
      _
    $region9: #{tpu_custom_call.1} parent=1 // pred_fallthru
      _
    // Predicated region
    $region10: #{tpu_custom_call.1} parent=1 // pred_check
      _
    $region11: #{tpu_custom_call.1} parent=1 // pred_check_branch
      %16 = sbr.rel (0) target = $region13
    $region12: #{tpu_custom_call.1} parent=1 // pred_region
      %s18 = ssub.s32 128, 128
      %19 = vsyncadd [#allocation4], %s18
      %s21 = sshll.u32 [#allocation3], 4
      %s22 = int_to_ptr.vmem [resolvable:$true] %s21
      %24 = dma.hbm_to_vmem [thread:$0]  %s2, 128, %s22, [#allocation4]
    $region13: #{tpu_custom_call.1} parent=1 // pred_fallthru
      _
    // Predicated region
    $region14: #{tpu_custom_call.1} parent=1 // pred_check
      _
    $region15: #{tpu_custom_call.1} parent=1 // pred_check_branch
      %26 = sbr.rel (0) target = $region17
    $region16: #{tpu_custom_call.1} parent=1 // pred_region
      %27 = dma.done [#allocation4], 128
    $region17: #{tpu_custom_call.1} parent=1 // pred_fallthru
      _
    %v28 = vld [vmem:[%s1] sm:$0x1]
    %v29 = vld [vmem:[#allocation3] sm:$0xff]
    %s30 = sld [smem:[#allocation2]]
    %v31 = vstv %s30
    %32 = vmatprep.subr.mxu0 0.0
    %33 = vmatpush1.xpose.msra.mxu0 %v29
    %34 = vmatprep.subr.mxu0 0.0
    %35 = vmatpush1.xpose.msra.mxu0 0.0
    %36 = vmatprep.subr.mxu0 0.0
    %37 = vmatpush1.xpose.msra.mxu0 0.0
    %38 = vmatprep.subr.mxu0 0.0
    %39 = vmatpush1.xpose.msra.mxu0 0.0
    %40 = vmatprep.subr.mxu0 0.0
    %41 = vmatpush1.xpose.msra.mxu0 0.0
    %42 = vmatprep.subr.mxu0 0.0
    %43 = vmatpush1.xpose.msra.mxu0 0.0
    %44 = vmatprep.subr.mxu0 0.0
    %45 = vmatpush1.xpose.msra.mxu0 0.0
    %46 = vmatprep.subr.mxu0 0.0
    %47 = vmatpush1.xpose.msra.mxu0 0.0
    %48 = vmatprep.subr.mxu0 0.0
    %49 = vmatpush1.xpose.msra.mxu0 0.0
    %50 = vmatprep.subr.mxu0 0.0
    %51 = vmatpush1.xpose.msra.mxu0 0.0
    %52 = vmatprep.subr.mxu0 0.0
    %53 = vmatpush1.xpose.msra.mxu0 0.0
    %54 = vmatprep.subr.mxu0 0.0
    %55 = vmatpush1.xpose.msra.mxu0 0.0
    %56 = vmatprep.subr.mxu0 0.0
    %57 = vmatpush1.xpose.msra.mxu0 0.0
    %58 = vmatprep.subr.mxu0 0.0
    %59 = vmatpush1.xpose.msra.mxu0 0.0
    %60 = vmatprep.subr.mxu0 0.0
    %61 = vmatpush1.xpose.msra.mxu0 0.0
    %62 = vmatprep.subr.mxu0 0.0
    %63 = vmatpush1.xpose.msra.mxu0 0.0
    %64 = vmatprep.subr.mxu0 0.0
    %65 = vmatpush1.xpose.msra.mxu0 0.0
    %66 = vmatprep.subr.mxu0 0.0
    %67 = vmatpush1.xpose.msra.mxu0 0.0
    %68 = vmatprep.subr.mxu0 0.0
    %69 = vmatpush1.xpose.msra.mxu0 0.0
    %70 = vmatprep.subr.mxu0 0.0
    %71 = vmatpush1.xpose.msra.mxu0 0.0
    %72 = vmatprep.subr.mxu0 0.0
    %73 = vmatpush1.xpose.msra.mxu0 0.0
    %74 = vmatprep.subr.mxu0 0.0
    %75 = vmatpush1.xpose.msra.mxu0 0.0
    %76 = vmatprep.subr.mxu0 0.0
    %77 = vmatpush1.xpose.msra.mxu0 0.0
    %78 = vmatprep.subr.mxu0 0.0
    %79 = vmatpush1.xpose.msra.mxu0 0.0
    %80 = vmatprep.subr.mxu0 0.0
    %81 = vmatpush1.xpose.msra.mxu0 0.0
    %82 = vmatprep.subr.mxu0 0.0
    %83 = vmatpush1.xpose.msra.mxu0 0.0
    %84 = vmatprep.subr.mxu0 0.0
    %85 = vmatpush1.xpose.msra.mxu0 0.0
    %86 = vmatprep.subr.mxu0 0.0
    %87 = vmatpush1.xpose.msra.mxu0 0.0
    %88 = vmatprep.subr.mxu0 0.0
    %89 = vmatpush1.xpose.msra.mxu0 0.0
    %90 = vmatprep.subr.mxu0 0.0
    %91 = vmatpush1.xpose.msra.mxu0 0.0
    %92 = vmatprep.subr.mxu0 0.0
    %93 = vmatpush1.xpose.msra.mxu0 0.0
    %94 = vmatprep.subr.mxu0 0.0
    %95 = vmatpush1.xpose.msra.mxu0 0.0
    %96 = vmatprep.mubr.f32.mxu0 0.0
    %97 = vmatmul.mubr.f32.gmra.mrb[0].mxu0 %v28
    %v98 = vpop.f32.mrb[0].mxu0
    %v99 = vadd.f32 %v31, %v98
    %v100 = vpop.f32.mrb[0].mxu0
    %101 = vdwg.mxu0
    %v102 = vxor.u32 %v99, 2147483648
    %v103 = vmul.f32 %v102, 1.442695
    %v104 = vpow.pop %v103
    %v105 = vadd.f32 %v104, 1.0
    %v106 = vrcp.pop %v105
    %v107 = vmul.f32 1.0, %v106
    %vm108 = vcmask 57344
    %109 = vst.msk [vmem:[#allocation6] sm:$0x1] %vm108, %v107
    // Predicated region
    $region18: #{tpu_custom_call.1} parent=1 // pred_check
      _
    $region19: #{tpu_custom_call.1} parent=1 // pred_check_branch
      %111 = sbr.rel (0) target = $region21
    $region20: #{tpu_custom_call.1} parent=1 // pred_region
      %s113 = ssub.s32 16, 16
      %114 = vsyncadd [#allocation5], %s113
      %s116 = sshll.u32 [#allocation6], 4
      %s117 = int_to_ptr.vmem [resolvable:$true] %s116
      %119 = dma.vmem_to_hbm [thread:$0]  %s117, 16, %s3, [#allocation5]
    $region21: #{tpu_custom_call.1} parent=1 // pred_fallthru
      _
    // Predicated region
    $region22: #{tpu_custom_call.1} parent=1 // pred_check
      _
    $region23: #{tpu_custom_call.1} parent=1 // pred_check_branch
      %121 = sbr.rel (0) target = $region25
    $region24: #{tpu_custom_call.1} parent=1 // pred_region
      %122 = dma.done [#allocation5], 16
    $region25: #{tpu_custom_call.1} parent=1 // pred_fallthru
      _
    %123 = vsyncpa [#allocation4], 1
    %124 = vsyncpa [#allocation5], 1

</llo_original>
